<compile_context>
chip_gen: v6e
topology: v6e:2x2x1
jax: 0.10.0
libtpu: 0.0.40
codegen_flags: <defaults>
</compile_context>

<pallas_src>
import jax
import jax.numpy as jnp
import numpy as np
from jax.experimental import pallas as pl
from jax.experimental.pallas import tpu as pltpu


def transition_kernel(x_ref, scale_ref, shift_ref, w_ref, o_ref):
    # x_ref:     (1, TH, W, Cin)         spatial row-tile of one sample (NHWC)
    # scale_ref: (1, Cin)                folded BN scale = gamma / sqrt(var+eps)
    # shift_ref: (1, Cin)                folded BN shift = beta - mean * scale
    # w_ref:     (Cin, Cout)             1x1 conv weight, already scaled by 1/4
    # o_ref:     (1, TH//2, W//2, Cout)
    _, TH, W, Cin = x_ref.shape
    Cout = w_ref.shape[1]

    # BatchNorm (inference) + ReLU, elementwise on the VPU (f32 in-vreg).
    x = x_ref[0].astype(jnp.float32)                      # (TH, W, Cin)
    scale = scale_ref[...].reshape(1, 1, Cin)
    shift = shift_ref[...].reshape(1, 1, Cin)
    y = jnp.maximum(x * scale + shift, 0.0)

    # 2x2 sum-pool BEFORE the 1x1 conv (1/4 factor folded into w_ref).
    # H-pool: leading-dim split + sum == adding alternate (W, Cin) slabs.
    p = y.reshape(TH // 2, 2, W, Cin).sum(axis=1)         # (TH//2, W, Cin)
    # W-pool: pairwise add along the sublane axis.
    p = p.reshape(TH // 2, W // 2, 2, Cin).sum(axis=2)    # (TH//2, W//2, Cin)

    # 1x1 conv == per-pixel channel matmul on the MXU, at pooled resolution.
    z = jnp.dot(p.reshape((TH // 2) * (W // 2), Cin), w_ref[...],
                preferred_element_type=jnp.float32)       # (npix, Cout)

    o_ref[0] = z.reshape(TH // 2, W // 2, Cout).astype(o_ref.dtype)


def _choose_tile_h(H, W, Cin, Cout, x_itemsize, budget_bytes=8 * 1024 * 1024):
    """Largest even divisor of H whose double-buffered tiles fit the budget."""
    cands = [t for t in range(2, H + 1, 2) if H % t == 0]

    def tile_bytes(t):
        cin_l = max(Cin, 128)          # lane padding in VMEM
        cout_l = max(Cout, 128)
        inp = t * W * cin_l * x_itemsize
        out = (t // 2) * (W // 2) * cout_l * 4
        return 2 * (inp + out)         # double-buffered input + output

    ok = [t for t in cands if tile_bytes(t) <= budget_bytes] or [cands[0]]
    th = max(ok)
    if th == H:                        # prefer >= 2 pipeline steps along H
        smaller = [t for t in ok if t < H]
        if smaller:
            th = max(smaller)
    return th


def transition_forward(x_nchw, gamma, beta, running_mean, running_var, conv_w,
                       eps=1e-5):
    """Pallas implementation of Transition.forward (BN eval mode)."""
    N, Cin, H, W = x_nchw.shape
    Cout = conv_w.shape[0]
    assert H % 2 == 0 and W % 2 == 0, "2x2 avg pool requires even H and W"

    # Fold BN into a per-channel affine transform (inference semantics).
    scale = (gamma / jnp.sqrt(running_var + eps)).astype(jnp.float32)
    shift = (beta - running_mean * scale).astype(jnp.float32)
    scale = scale.reshape(1, Cin)
    shift = shift.reshape(1, Cin)

    # (Cout, Cin, 1, 1) -> (Cin, Cout) channel matrix; fold the 2x2-mean 1/4
    # factor into the weights so the kernel only sum-pools.
    wmat = (conv_w.reshape(Cout, Cin).T * 0.25).astype(jnp.float32)

    # NCHW -> NHWC (layout plumbing only; keep the source dtype, no upcast).
    x_nhwc = jnp.transpose(x_nchw, (0, 2, 3, 1))

    TH = _choose_tile_h(H, W, Cin, Cout, x_nhwc.dtype.itemsize)

    out_nhwc = pl.pallas_call(
        transition_kernel,
        out_shape=jax.ShapeDtypeStruct((N, H // 2, W // 2, Cout), x_nhwc.dtype),
        grid=(N, H // TH),
        in_specs=[
            pl.BlockSpec((1, TH, W, Cin), lambda n, h: (n, h, 0, 0)),
            pl.BlockSpec((1, Cin), lambda n, h: (0, 0)),
            pl.BlockSpec((1, Cin), lambda n, h: (0, 0)),
            pl.BlockSpec((Cin, Cout), lambda n, h: (0, 0)),
        ],
        out_specs=pl.BlockSpec((1, TH // 2, W // 2, Cout),
                               lambda n, h: (n, h, 0, 0)),
        compiler_params=pltpu.CompilerParams(
            dimension_semantics=("parallel", "parallel"),
            vmem_limit_bytes=32 * 1024 * 1024),
    )(x_nhwc, scale, shift, wmat)

    return jnp.transpose(out_nhwc, (0, 3, 1, 2))   # back to NCHW


def transition_reference(x, gamma, beta, mean, var, conv_w, eps=1e-5):
    """Plain-JAX reference mirroring the PyTorch forward (BN eval mode)."""
    xhat = (x - mean[None, :, None, None]) / jnp.sqrt(
        var[None, :, None, None] + eps)
    y = gamma[None, :, None, None] * xhat + beta[None, :, None, None]
    y = jnp.maximum(y, 0.0)
    z = jax.lax.conv_general_dilated(
        y, conv_w, window_strides=(1, 1), padding="VALID",
        dimension_numbers=("NCHW", "OIHW", "NCHW"))
    N, C, H, W = z.shape
    return z.reshape(N, C, H // 2, 2, W // 2, 2).mean(axis=(3, 5))


if __name__ == "__main__":
    # Small shapes consistent with the module: batch=2, inplanes=8,
    # outplanes=4, spatial=16x16.
    N, Cin, Cout, H, W = 2, 8, 4, 16, 16

    key = jax.random.PRNGKey(0)
    kx, kg, kb, km, kv, kw = jax.random.split(key, 6)

    x = jax.random.normal(kx, (N, Cin, H, W), dtype=jnp.float32)

    # Deterministic synthetic parameters (BN affine + running stats, conv W).
    gamma = 1.0 + 0.1 * jax.random.normal(kg, (Cin,), dtype=jnp.float32)
    beta = 0.1 * jax.random.normal(kb, (Cin,), dtype=jnp.float32)
    running_mean = 0.1 * jax.random.normal(km, (Cin,), dtype=jnp.float32)
    running_var = 0.5 + jnp.abs(jax.random.normal(kv, (Cin,),
                                                  dtype=jnp.float32))
    conv_w = (jax.random.normal(kw, (Cout, Cin, 1, 1), dtype=jnp.float32)
              / np.sqrt(Cin))

    out = transition_forward(x, gamma, beta, running_mean, running_var, conv_w)
    out = jax.block_until_ready(out)

    ref = transition_reference(x, gamma, beta, running_mean, running_var,
                               conv_w)
    assert out.shape == (N, Cout, H // 2, W // 2), out.shape
    np.testing.assert_allclose(np.asarray(out), np.asarray(ref),
                               rtol=1e-5, atol=2e-5)

    print("KERNEL_OK")
</pallas_src>

<mosaic_0001>
module attributes {stable_mosaic.version = 11 : i64} {
  func.func @transition_kernel(%arg0: i32, %arg1: i32, %arg2: memref<1x8x16x8xf32, #tpu.memory_space<vmem>>, %arg3: memref<1x8xf32, #tpu.memory_space<vmem>>, %arg4: memref<1x8xf32, #tpu.memory_space<vmem>>, %arg5: memref<8x4xf32, #tpu.memory_space<vmem>>, %arg6: memref<1x4x8x4xf32, #tpu.memory_space<vmem>>) attributes {dimension_semantics = [#tpu.dimension_semantics<parallel>, #tpu.dimension_semantics<parallel>], iteration_bounds = array<i64: 2, 2>, scalar_prefetch = 0 : i64, scratch_operands = 0 : i64, tpu.core_type = #tpu.core_type<tc>, window_params = [{transform_indices = @transform_0, window_bounds = array<i64: 1, 8, 16, 8>}, {pipeline_mode = #tpu.pipeline_mode<synchronous>, transform_indices = @transform_1, window_bounds = array<i64: 1, 8>}, {pipeline_mode = #tpu.pipeline_mode<synchronous>, transform_indices = @transform_2, window_bounds = array<i64: 1, 8>}, {pipeline_mode = #tpu.pipeline_mode<synchronous>, transform_indices = @transform_3, window_bounds = array<i64: 8, 4>}, {transform_indices = @transform_4, window_bounds = array<i64: 1, 4, 8, 4>}]} {
    %c0 = arith.constant 0 : index
    %c0_0 = arith.constant 0 : index
    %c0_1 = arith.constant 0 : index
    %c0_2 = arith.constant 0 : index
    %0 = vector.load %arg2[%c0, %c0_0, %c0_1, %c0_2] : memref<1x8x16x8xf32, #tpu.memory_space<vmem>>, vector<1x8x16x8xf32>
    %1 = vector.shape_cast %0 : vector<1x8x16x8xf32> to vector<8x16x8xf32>
    %c0_3 = arith.constant 0 : index
    %c0_4 = arith.constant 0 : index
    %2 = vector.load %arg3[%c0_3, %c0_4] : memref<1x8xf32, #tpu.memory_space<vmem>>, vector<1x8xf32>
    %3 = vector.shape_cast %2 : vector<1x8xf32> to vector<1x1x8xf32>
    %c0_5 = arith.constant 0 : index
    %c0_6 = arith.constant 0 : index
    %4 = vector.load %arg4[%c0_5, %c0_6] : memref<1x8xf32, #tpu.memory_space<vmem>>, vector<1x8xf32>
    %5 = vector.shape_cast %4 : vector<1x8xf32> to vector<1x1x8xf32>
    %6 = vector.broadcast %3 : vector<1x1x8xf32> to vector<8x16x8xf32>
    %7 = arith.mulf %1, %6 : vector<8x16x8xf32>
    %8 = vector.broadcast %5 : vector<1x1x8xf32> to vector<8x16x8xf32>
    %9 = arith.addf %7, %8 : vector<8x16x8xf32>
    %cst = arith.constant 0.000000e+00 : f32
    %10 = vector.broadcast %cst : f32 to vector<8x16x8xf32>
    %11 = arith.maximumf %9, %10 : vector<8x16x8xf32>
    %12 = vector.shape_cast %11 : vector<8x16x8xf32> to vector<4x2x16x8xf32>
    %cst_7 = arith.constant dense<0.000000e+00> : vector<4x16x8xf32>
    %13 = vector.multi_reduction <add>, %12, %cst_7 [1] : vector<4x2x16x8xf32> to vector<4x16x8xf32>
    %14 = vector.shape_cast %13 : vector<4x16x8xf32> to vector<4x8x2x8xf32>
    %cst_8 = arith.constant dense<0.000000e+00> : vector<4x8x8xf32>
    %15 = vector.multi_reduction <add>, %14, %cst_8 [2] : vector<4x8x2x8xf32> to vector<4x8x8xf32>
    %16 = vector.shape_cast %15 : vector<4x8x8xf32> to vector<32x8xf32>
    %c0_9 = arith.constant 0 : index
    %c0_10 = arith.constant 0 : index
    %17 = vector.load %arg5[%c0_9, %c0_10] : memref<8x4xf32, #tpu.memory_space<vmem>>, vector<8x4xf32>
    %cst_11 = arith.constant dense<0.000000e+00> : vector<32x4xf32>
    %18 = tpu.matmul %16, %17, %cst_11 {dimension_numbers = #tpu.dot_dimension_numbers<[1], [0], [0], [1], [0, 0, 1, 1], [], []>} : vector<32x8xf32>, vector<8x4xf32>, vector<32x4xf32> -> vector<32x4xf32>
    %19 = vector.shape_cast %18 : vector<32x4xf32> to vector<4x8x4xf32>
    %c0_12 = arith.constant 0 : index
    %c0_13 = arith.constant 0 : index
    %c0_14 = arith.constant 0 : index
    %c0_15 = arith.constant 0 : index
    %20 = vector.load %arg6[%c0_12, %c0_13, %c0_14, %c0_15] : memref<1x4x8x4xf32, #tpu.memory_space<vmem>>, vector<1x4x8x4xf32>
    %21 = vector.shape_cast %20 : vector<1x4x8x4xf32> to vector<4x8x4xf32>
    %22 = vector.shape_cast %19 : vector<4x8x4xf32> to vector<1x4x8x4xf32>
    tpu.vector_store %arg6[%c0_12, %c0_13, %c0_14, %c0_15], %22 {strides = array<i32>} : memref<1x4x8x4xf32, #tpu.memory_space<vmem>>, vector<1x4x8x4xf32>,
    return
  }
  func.func @transform_0(%arg0: i32, %arg1: i32) -> (i32, i32, i32, i32) {
    %c0_i32 = arith.constant 0 : i32
    %c0_i32_0 = arith.constant 0 : i32
    %c0_i32_1 = arith.constant 0 : i32
    return %arg0, %arg1, %c0_i32, %c0_i32_0 : i32, i32, i32, i32
  }
  func.func @transform_1(%arg0: i32, %arg1: i32) -> (i32, i32) {
    %c0_i32 = arith.constant 0 : i32
    %c0_i32_0 = arith.constant 0 : i32
    %c0_i32_1 = arith.constant 0 : i32
    return %c0_i32, %c0_i32_0 : i32, i32
  }
  func.func @transform_2(%arg0: i32, %arg1: i32) -> (i32, i32) {
    %c0_i32 = arith.constant 0 : i32
    %c0_i32_0 = arith.constant 0 : i32
    %c0_i32_1 = arith.constant 0 : i32
    return %c0_i32, %c0_i32_0 : i32, i32
  }
  func.func @transform_3(%arg0: i32, %arg1: i32) -> (i32, i32) {
    %c0_i32 = arith.constant 0 : i32
    %c0_i32_0 = arith.constant 0 : i32
    %c0_i32_1 = arith.constant 0 : i32
    return %c0_i32, %c0_i32_0 : i32, i32
  }
  func.func @transform_4(%arg0: i32, %arg1: i32) -> (i32, i32, i32, i32) {
    %c0_i32 = arith.constant 0 : i32
    %c0_i32_0 = arith.constant 0 : i32
    %c0_i32_1 = arith.constant 0 : i32
    return %arg0, %arg1, %c0_i32, %c0_i32_0 : i32, i32, i32, i32
  }
}

</mosaic_0001>

<llo_original>
// kernel: tpu_custom_call.1
$region0: #{tpu_custom_call.1}
  #allocation0 [shape = 'u32[]', space=smem, size = 0x4, offset = 0x4, fixed_abs, tag = 'smem constant byte address 0x4 - core index']
  #allocation1 [shape = 'u32[144,128]{1,0:T(1,128)}', space=vmem, size = 0x12000, scoped, tag = 'internal scratch']
  %s0 = inlined_call_operand.vmem [shape: f32[2,16,16,8], index: 0, kind: input, shape index: {}]
  %s1 = inlined_call_operand.vmem [shape: f32[1,8], index: 1, kind: input, shape index: {}]
  %s2 = inlined_call_operand.vmem [shape: f32[1,8], index: 2, kind: input, shape index: {}]
  %s3 = inlined_call_operand.vmem [shape: f32[8,4], index: 3, kind: input, shape index: {}]
  %s4 = inlined_call_operand.vmem [shape: f32[2,8,8,4], index: 4, kind: output, shape index: {}]
  %s5 = sld [smem:[#allocation0]]
  $region49: #{tpu_custom_call.1} parent=0
    _
  %s7 = ssub.s32 1, %s5
  %s8 = scalar_select 0, %s7, %s5
  loop: start=0, step=1, limit=6
  $region2: #{tpu_custom_call.1} parent=0 // loop_pre_header
    _
  $region3: #{tpu_custom_call.1} parent=0 // loop_header
    %s10 = sphi 0, %s14
    %p11 = scmp.ge.s32.totalorder %s10, 6
    %s17 = sphi 0, %s29
    %s18 = sphi 0, %s25
    %s19 = sphi 0, %s17
    %s20 = sphi 0, %s18
    %s21 = sphi 0, %s19
    %s22 = sphi 0, %s20
    %s34 = sphi 0, %s36
    %s37 = sphi 0, %s34
    %s38 = sphi 0, %s37
    %s54 = sphi 0, %s38
    %s58 = sphi 0, %s58
    %s60 = sphi 0, %s58
    %s61 = sphi 0, %s60
    %s75 = sphi 0, %s61
    %s79 = sphi 0, %s79
    %s81 = sphi 0, %s79
    %s82 = sphi 0, %s81
    %s96 = sphi 0, %s82
    %s100 = sphi 0, %s100
    %s102 = sphi 0, %s100
    %s103 = sphi 0, %s102
    %s117 = sphi 0, %s103
    %s125 = sphi 0, %s127
    %s128 = sphi 0, %s125
    %s129 = sphi 0, %s128
    %s145 = sphi 0, %s129
  $region4: #{tpu_custom_call.1} parent=0 // loop_header_branch
    %13 = sbr.rel (%p11) target = $region8
  $region5: #{tpu_custom_call.1} parent=0 // loop_body
    %s15 = ssub.s32 %s10, 1
    %s16 = ssub.s32 %s10, 2
    %s23 = sadd.s32 1, %s18
    %p24 = scmp.ge.s32.totalorder %s23, 2
    %s25 = scalar_select %p24, 0, %s23
    %s26 = sadd.s32 1, %s17
    %s27 = scalar_select %p24, %s26, %s17
    %p28 = scmp.ge.s32.totalorder %s27, 2
    %s29 = scalar_select %p28, 0, %s27
    %s30 = ssub.s32 %s17, %s29
    %s31 = ssub.s32 %s18, %s25
    %s32 = sor.u32 %s30, %s31
    %p33 = scmp.eq.s32.totalorder %s32, 0
    %s35 = sadd.s32 %s34, 1
    %s36 = scalar_select %p33, %s34, %s35
    %p39 = pneg %p33
    %p40 = scmp.eq.s32.totalorder %s10, 3
    %p41 = por %p39, %p40
    %p42 = scmp.ne.s32.totalorder %s34, %s37
    %p43 = scmp.eq.s32.totalorder %s10, 0
    %p44 = por %p42, %p43
    %p45 = scmp.ne.s32.totalorder %s34, %s37
    %p46 = scmp.eq.s32.totalorder %s15, 3
    %p47 = por %p45, %p46
    %p48 = scmp.ne.s32.totalorder %s37, %s38
    %p49 = scmp.eq.s32.totalorder %s15, 0
    %p50 = por %p48, %p49
    %p51 = scmp.ne.s32.totalorder %s37, %s38
    %p52 = scmp.eq.s32.totalorder %s16, 3
    %p53 = por %p51, %p52
    %p55 = scmp.ne.s32.totalorder %s38, %s54
    %p56 = scmp.eq.s32.totalorder %s16, 0
    %p57 = por %p55, %p56
    %s59 = sadd.s32 %s58, 1
    %p62 = scmp.eq.s32.totalorder %s10, 3
    %p63 = scmp.ne.s32.totalorder %s58, %s60
    %p64 = scmp.eq.s32.totalorder %s10, 0
    %p65 = por %p63, %p64
    %p66 = scmp.ne.s32.totalorder %s58, %s60
    %p67 = scmp.eq.s32.totalorder %s15, 3
    %p68 = por %p66, %p67
    %p69 = scmp.ne.s32.totalorder %s60, %s61
    %p70 = scmp.eq.s32.totalorder %s15, 0
    %p71 = por %p69, %p70
    %p72 = scmp.ne.s32.totalorder %s60, %s61
    %p73 = scmp.eq.s32.totalorder %s16, 3
    %p74 = por %p72, %p73
    %p76 = scmp.ne.s32.totalorder %s61, %s75
    %p77 = scmp.eq.s32.totalorder %s16, 0
    %p78 = por %p76, %p77
    %s80 = sadd.s32 %s79, 1
    %p83 = scmp.eq.s32.totalorder %s10, 3
    %p84 = scmp.ne.s32.totalorder %s79, %s81
    %p85 = scmp.eq.s32.totalorder %s10, 0
    %p86 = por %p84, %p85
    %p87 = scmp.ne.s32.totalorder %s79, %s81
    %p88 = scmp.eq.s32.totalorder %s15, 3
    %p89 = por %p87, %p88
    %p90 = scmp.ne.s32.totalorder %s81, %s82
    %p91 = scmp.eq.s32.totalorder %s15, 0
    %p92 = por %p90, %p91
    %p93 = scmp.ne.s32.totalorder %s81, %s82
    %p94 = scmp.eq.s32.totalorder %s16, 3
    %p95 = por %p93, %p94
    %p97 = scmp.ne.s32.totalorder %s82, %s96
    %p98 = scmp.eq.s32.totalorder %s16, 0
    %p99 = por %p97, %p98
    %s101 = sadd.s32 %s100, 1
    %p104 = scmp.eq.s32.totalorder %s10, 3
    %p105 = scmp.ne.s32.totalorder %s100, %s102
    %p106 = scmp.eq.s32.totalorder %s10, 0
    %p107 = por %p105, %p106
    %p108 = scmp.ne.s32.totalorder %s100, %s102
    %p109 = scmp.eq.s32.totalorder %s15, 3
    %p110 = por %p108, %p109
    %p111 = scmp.ne.s32.totalorder %s102, %s103
    %p112 = scmp.eq.s32.totalorder %s15, 0
    %p113 = por %p111, %p112
    %p114 = scmp.ne.s32.totalorder %s102, %s103
    %p115 = scmp.eq.s32.totalorder %s16, 3
    %p116 = por %p114, %p115
    %p118 = scmp.ne.s32.totalorder %s103, %s117
    %p119 = scmp.eq.s32.totalorder %s16, 0
    %p120 = por %p118, %p119
    %s121 = ssub.s32 %s17, %s29
    %s122 = ssub.s32 %s18, %s25
    %s123 = sor.u32 %s121, %s122
    %p124 = scmp.eq.s32.totalorder %s123, 0
    %s126 = sadd.s32 %s125, 1
    %s127 = scalar_select %p124, %s125, %s126
    %p130 = pneg %p124
    %p131 = scmp.eq.s32.totalorder %s10, 3
    %p132 = por %p130, %p131
    %p133 = scmp.ne.s32.totalorder %s125, %s128
    %p134 = scmp.eq.s32.totalorder %s10, 0
    %p135 = por %p133, %p134
    %p136 = scmp.ne.s32.totalorder %s125, %s128
    %p137 = scmp.eq.s32.totalorder %s15, 3
    %p138 = por %p136, %p137
    %p139 = scmp.ne.s32.totalorder %s128, %s129
    %p140 = scmp.eq.s32.totalorder %s15, 0
    %p141 = por %p139, %p140
    %p142 = scmp.ne.s32.totalorder %s128, %s129
    %p143 = scmp.eq.s32.totalorder %s16, 3
    %p144 = por %p142, %p143
    %p146 = scmp.ne.s32.totalorder %s129, %s145
    %p147 = scmp.eq.s32.totalorder %s16, 0
    %p148 = por %p146, %p147
    %p149 = scmp.le.s32.totalorder 1, %s10
    %p150 = scmp.lt.s32.totalorder %s10, 5
    %p151 = pnand %p149, %p150
    %p152 = pneg %p151
    // Predicated region
    $region9: #{tpu_custom_call.1} parent=5 // pred_check
      _
    $region10: #{tpu_custom_call.1} parent=5 // pred_check_branch
      %154 = sbr.rel (%p151) target = $region12
    $region11: #{tpu_custom_call.1} parent=5 // pred_region
      %s155 = ssub.s32 %s10, 1
      // Predicated region
      $region13: #{tpu_custom_call.1} parent=11 // pred_check
        %p156 = pneg %p71
      $region14: #{tpu_custom_call.1} parent=11 // pred_check_branch
        %158 = sbr.rel (%p156) target = $region16
      $region15: #{tpu_custom_call.1} parent=11 // pred_region
        _
      $region16: #{tpu_custom_call.1} parent=11 // pred_fallthru
        _
      // Predicated region
      $region17: #{tpu_custom_call.1} parent=11 // pred_check
        %p159 = pneg %p92
      $region18: #{tpu_custom_call.1} parent=11 // pred_check_branch
        %161 = sbr.rel (%p159) target = $region20
      $region19: #{tpu_custom_call.1} parent=11 // pred_region
        _
      $region20: #{tpu_custom_call.1} parent=11 // pred_fallthru
        _
      // Predicated region
      $region21: #{tpu_custom_call.1} parent=11 // pred_check
        %p162 = pneg %p113
      $region22: #{tpu_custom_call.1} parent=11 // pred_check_branch
        %164 = sbr.rel (%p162) target = $region24
      $region23: #{tpu_custom_call.1} parent=11 // pred_region
        _
      $region24: #{tpu_custom_call.1} parent=11 // pred_fallthru
        _
    $region12: #{tpu_custom_call.1} parent=5 // pred_fallthru
      _
    %p165 = scmp.lt.s32.totalorder %s10, 4
    // Predicated region
    $region25: #{tpu_custom_call.1} parent=5 // pred_check
      %p166 = pneg %p165
    $region26: #{tpu_custom_call.1} parent=5 // pred_check_branch
      %168 = sbr.rel (%p166) target = $region28
    $region27: #{tpu_custom_call.1} parent=5 // pred_region
      // Predicated region
      $region29: #{tpu_custom_call.1} parent=27 // pred_check
        %p169 = pneg %p44
      $region30: #{tpu_custom_call.1} parent=27 // pred_check_branch
        %171 = sbr.rel (%p169) target = $region32
      $region31: #{tpu_custom_call.1} parent=27 // pred_region
        %s172 = smul.u32 8, %s18
        %p173 = scmp.lt.s32.totalorder %s17, 1
        %s174 = scalar_select %p173, %s17, 1
        %p175 = scmp.lt.s32.totalorder %s172, 15
        %s176 = scalar_select %p175, %s172, 15
        %s177 = smul.addr %s176, 2
        %s178 = smul.addr %s174, 32
        %s179 = sadd.s32 %s177, %s178
        %s180 = smul.addr %s179, 8
        %s181 = scalar_lea.vmem %s0, %s180
        %s182 = smul.u32 8, %s18
      $region32: #{tpu_custom_call.1} parent=27 // pred_fallthru
        _
    $region28: #{tpu_custom_call.1} parent=5 // pred_fallthru
      _
    %p183 = scmp.le.s32.totalorder 1, %s10
    %p184 = scmp.lt.s32.totalorder %s10, 5
    %p185 = pnand %p183, %p184
    %p186 = pneg %p185
    // Predicated region
    $region33: #{tpu_custom_call.1} parent=5 // pred_check
      _
    $region34: #{tpu_custom_call.1} parent=5 // pred_check_branch
      %188 = sbr.rel (%p185) target = $region36
    $region35: #{tpu_custom_call.1} parent=5 // pred_region
      %s189 = ssub.s32 %s10, 1
      %s190 = smul.u32 8, %s20
      %p191 = scmp.lt.s32.totalorder %s19, 1
      %s192 = scalar_select %p191, %s19, 1
      %p193 = scmp.lt.s32.totalorder %s190, 15
      %s194 = scalar_select %p193, %s190, 15
      %s195 = smul.addr %s194, 2
      %s196 = smul.addr %s192, 32
      %s197 = sadd.s32 %s195, %s196
      %s198 = smul.addr %s197, 8
      %s199 = scalar_lea.vmem %s0, %s198
      %p200 = pneg %p50
      %p201 = pneg %p47
      %p202 = pneg %p71
      %p203 = pneg %p68
      %p204 = pneg %p92
      %p205 = pneg %p89
      %p206 = pneg %p113
      %p207 = pneg %p110
      %p208 = pneg %p141
      %p209 = pneg %p138
      %s210 = smul.u32 4, %s20
      %p211 = scmp.lt.s32.totalorder %s19, 1
      %s212 = scalar_select %p211, %s19, 1
      %p213 = scmp.lt.s32.totalorder %s210, 7
      %s214 = scalar_select %p213, %s210, 7
      %s215 = smul.addr %s212, 8
      %s216 = sadd.s32 %s214, %s215
      %s217 = smul.addr %s216, 8
      %s218 = scalar_lea.vmem %s4, %s217
      %s219 = smul.u32 8, %s20
      %p220 = scmp.lt.s32.totalorder %s19, 1
      %s221 = scalar_select %p220, %s19, 1
      %p222 = scmp.lt.s32.totalorder %s219, 15
      %s223 = scalar_select %p222, %s219, 15
      %s224 = smul.addr %s223, 2
      %s225 = smul.addr %s221, 32
      %s226 = sadd.s32 %s224, %s225
      %s227 = smul.addr %s226, 8
      %s228 = scalar_lea.vmem %s0, %s227
      %s229 = smul.u32 8, %s20
      %s230 = smul.u32 4, %s20
      %p231 = scmp.lt.s32.totalorder %s19, 1
      %s232 = scalar_select %p231, %s19, 1
      %p233 = scmp.lt.s32.totalorder %s230, 7
      %s234 = scalar_select %p233, %s230, 7
      %s235 = smul.addr %s232, 8
      %s236 = sadd.s32 %s234, %s235
      %s237 = smul.addr %s236, 8
      %s238 = scalar_lea.vmem %s4, %s237
      %s239 = smul.u32 4, %s20
      %v240 = vld [vmem:[%s228] sm:$0xff]
      %v241 = vld [vmem:[%s228 + $0x8] sm:$0xff]
      %v242 = vld [vmem:[%s228 + $0x10] sm:$0xff]
      %v243 = vld [vmem:[%s228 + $0x18] sm:$0xff]
      %v244 = vld [vmem:[%s228 + $0x20] sm:$0xff]
      %v245 = vld [vmem:[%s228 + $0x28] sm:$0xff]
      %v246 = vld [vmem:[%s228 + $0x30] sm:$0xff]
      %v247 = vld [vmem:[%s228 + $0x38] sm:$0xff]
      %v248 = vld [vmem:[%s228 + $0x40] sm:$0xff]
      %v249 = vld [vmem:[%s228 + $0x48] sm:$0xff]
      %v250 = vld [vmem:[%s228 + $0x50] sm:$0xff]
      %v251 = vld [vmem:[%s228 + $0x58] sm:$0xff]
      %v252 = vld [vmem:[%s228 + $0x60] sm:$0xff]
      %v253 = vld [vmem:[%s228 + $0x68] sm:$0xff]
      %v254 = vld [vmem:[%s228 + $0x70] sm:$0xff]
      %v255 = vld [vmem:[%s228 + $0x78] sm:$0xff]
      %v256 = vld [vmem:[%s1] sm:$0x1]
      %v257 = vld [vmem:[%s2] sm:$0x1]
      %v259 = vlaneseq
      %v260 = vshrl.u32 %v259, 7
      %v261 = vsub.s32 0, %v260
      %v262 = vrot.slane %v256, %v261
      %v264 = vmul.f32 %v240, %v262
      %v265 = vmul.f32 %v241, %v262
      %v266 = vmul.f32 %v242, %v262
      %v267 = vmul.f32 %v243, %v262
      %v268 = vmul.f32 %v244, %v262
      %v269 = vmul.f32 %v245, %v262
      %v270 = vmul.f32 %v246, %v262
      %v271 = vmul.f32 %v247, %v262
      %v272 = vmul.f32 %v248, %v262
      %v273 = vmul.f32 %v249, %v262
      %v274 = vmul.f32 %v250, %v262
      %v275 = vmul.f32 %v251, %v262
      %v276 = vmul.f32 %v252, %v262
      %v277 = vmul.f32 %v253, %v262
      %v278 = vmul.f32 %v254, %v262
      %v279 = vmul.f32 %v255, %v262
      %v281 = vlaneseq
      %v282 = vshrl.u32 %v281, 7
      %v283 = vsub.s32 0, %v282
      %v284 = vrot.slane %v257, %v283
      %v286 = vadd.f32 %v264, %v284
      %v287 = vadd.f32 %v265, %v284
      %v288 = vadd.f32 %v266, %v284
      %v289 = vadd.f32 %v267, %v284
      %v290 = vadd.f32 %v268, %v284
      %v291 = vadd.f32 %v269, %v284
      %v292 = vadd.f32 %v270, %v284
      %v293 = vadd.f32 %v271, %v284
      %v294 = vadd.f32 %v272, %v284
      %v295 = vadd.f32 %v273, %v284
      %v296 = vadd.f32 %v274, %v284
      %v297 = vadd.f32 %v275, %v284
      %v298 = vadd.f32 %v276, %v284
      %v299 = vadd.f32 %v277, %v284
      %v300 = vadd.f32 %v278, %v284
      %v301 = vadd.f32 %v279, %v284
      %v302 = vmax.f32 %v286, 0.0
      %v303 = vmax.f32 %v287, 0.0
      %v304 = vmax.f32 %v288, 0.0
      %v305 = vmax.f32 %v289, 0.0
      %v306 = vmax.f32 %v290, 0.0
      %v307 = vmax.f32 %v291, 0.0
      %v308 = vmax.f32 %v292, 0.0
      %v309 = vmax.f32 %v293, 0.0
      %v310 = vmax.f32 %v294, 0.0
      %v311 = vmax.f32 %v295, 0.0
      %v312 = vmax.f32 %v296, 0.0
      %v313 = vmax.f32 %v297, 0.0
      %v314 = vmax.f32 %v298, 0.0
      %v315 = vmax.f32 %v299, 0.0
      %v316 = vmax.f32 %v300, 0.0
      %v317 = vmax.f32 %v301, 0.0
      %vm318 = vcmask 64512
      %v319 = vsel %vm318, %v302, 0.0
      %v320 = vsel %vm318, %v304, 0.0
      %v321 = vadd.f32 %v319, %v320
      %v322 = vsel %vm318, %v303, 0.0
      %v323 = vsel %vm318, %v305, 0.0
      %v324 = vadd.f32 %v322, %v323
      %v325 = vsel %vm318, %v306, 0.0
      %v326 = vsel %vm318, %v308, 0.0
      %v327 = vadd.f32 %v325, %v326
      %v328 = vsel %vm318, %v307, 0.0
      %v329 = vsel %vm318, %v309, 0.0
      %v330 = vadd.f32 %v328, %v329
      %v331 = vsel %vm318, %v310, 0.0
      %v332 = vsel %vm318, %v312, 0.0
      %v333 = vadd.f32 %v331, %v332
      %v334 = vsel %vm318, %v311, 0.0
      %v335 = vsel %vm318, %v313, 0.0
      %v336 = vadd.f32 %v334, %v335
      %v337 = vsel %vm318, %v314, 0.0
      %v338 = vsel %vm318, %v316, 0.0
      %v339 = vadd.f32 %v337, %v338
      %v340 = vsel %vm318, %v315, 0.0
      %v341 = vsel %vm318, %v317, 0.0
      %v342 = vadd.f32 %v340, %v341
      %v351 = vcombine.high %v321, %v321
      %v353 = vunpack.c.l.s4 1983009808
      %v354 = vunpack.c.0.s8 %v353
      %v355 = vlaneseq
      %v356 = vshrl.u32 %v355, 7
      %v357 = vsub.s32 %v354, %v356
      %v358 = vrot.slane %v321, %v357
      %v360 = vunpack.c.l.s4 1983009808
      %v361 = vunpack.c.0.s8 %v360
      %v362 = vlaneseq
      %v363 = vshrl.u32 %v362, 7
      %v364 = vsub.s32 %v361, %v363
      %v365 = vrot.slane %v351, %v364
      %v366 = vcombine.high %v358, %v358
      %v367 = vcombine.high %v365, %v365
      %v368 = vcombine.high %v324, %v324
      %v370 = vunpack.c.l.s4 1983009808
      %v371 = vunpack.c.0.s8 %v370
      %v372 = vlaneseq
      %v373 = vshrl.u32 %v372, 7
      %v374 = vsub.s32 %v371, %v373
      %v375 = vrot.slane %v324, %v374
      %v377 = vunpack.c.l.s4 1983009808
      %v378 = vunpack.c.0.s8 %v377
      %v379 = vlaneseq
      %v380 = vshrl.u32 %v379, 7
      %v381 = vsub.s32 %v378, %v380
      %v382 = vrot.slane %v368, %v381
      %v383 = vcombine.high %v375, %v375
      %v384 = vcombine.high %v382, %v382
      %v385 = vcombine.high %v327, %v327
      %v387 = vunpack.c.l.s4 1983009808
      %v388 = vunpack.c.0.s8 %v387
      %v389 = vlaneseq
      %v390 = vshrl.u32 %v389, 7
      %v391 = vsub.s32 %v388, %v390
      %v392 = vrot.slane %v327, %v391
      %v394 = vunpack.c.l.s4 1983009808
      %v395 = vunpack.c.0.s8 %v394
      %v396 = vlaneseq
      %v397 = vshrl.u32 %v396, 7
      %v398 = vsub.s32 %v395, %v397
      %v399 = vrot.slane %v385, %v398
      %v400 = vcombine.high %v392, %v392
      %v401 = vcombine.high %v399, %v399
      %v402 = vcombine.high %v330, %v330
      %v404 = vunpack.c.l.s4 1983009808
      %v405 = vunpack.c.0.s8 %v404
      %v406 = vlaneseq
      %v407 = vshrl.u32 %v406, 7
      %v408 = vsub.s32 %v405, %v407
      %v409 = vrot.slane %v330, %v408
      %v411 = vunpack.c.l.s4 1983009808
      %v412 = vunpack.c.0.s8 %v411
      %v413 = vlaneseq
      %v414 = vshrl.u32 %v413, 7
      %v415 = vsub.s32 %v412, %v414
      %v416 = vrot.slane %v402, %v415
      %v417 = vcombine.high %v409, %v409
      %v418 = vcombine.high %v416, %v416
      %v419 = vcombine.high %v333, %v333
      %v421 = vunpack.c.l.s4 1983009808
      %v422 = vunpack.c.0.s8 %v421
      %v423 = vlaneseq
      %v424 = vshrl.u32 %v423, 7
      %v425 = vsub.s32 %v422, %v424
      %v426 = vrot.slane %v333, %v425
      %v428 = vunpack.c.l.s4 1983009808
      %v429 = vunpack.c.0.s8 %v428
      %v430 = vlaneseq
      %v431 = vshrl.u32 %v430, 7
      %v432 = vsub.s32 %v429, %v431
      %v433 = vrot.slane %v419, %v432
      %v434 = vcombine.high %v426, %v426
      %v435 = vcombine.high %v433, %v433
      %v436 = vcombine.high %v336, %v336
      %v438 = vunpack.c.l.s4 1983009808
      %v439 = vunpack.c.0.s8 %v438
      %v440 = vlaneseq
      %v441 = vshrl.u32 %v440, 7
      %v442 = vsub.s32 %v439, %v441
      %v443 = vrot.slane %v336, %v442
      %v445 = vunpack.c.l.s4 1983009808
      %v446 = vunpack.c.0.s8 %v445
      %v447 = vlaneseq
      %v448 = vshrl.u32 %v447, 7
      %v449 = vsub.s32 %v446, %v448
      %v450 = vrot.slane %v436, %v449
      %v451 = vcombine.high %v443, %v443
      %v452 = vcombine.high %v450, %v450
      %v453 = vcombine.high %v339, %v339
      %v455 = vunpack.c.l.s4 1983009808
      %v456 = vunpack.c.0.s8 %v455
      %v457 = vlaneseq
      %v458 = vshrl.u32 %v457, 7
      %v459 = vsub.s32 %v456, %v458
      %v460 = vrot.slane %v339, %v459
      %v462 = vunpack.c.l.s4 1983009808
      %v463 = vunpack.c.0.s8 %v462
      %v464 = vlaneseq
      %v465 = vshrl.u32 %v464, 7
      %v466 = vsub.s32 %v463, %v465
      %v467 = vrot.slane %v453, %v466
      %v468 = vcombine.high %v460, %v460
      %v469 = vcombine.high %v467, %v467
      %v470 = vcombine.high %v342, %v342
      %v472 = vunpack.c.l.s4 1983009808
      %v473 = vunpack.c.0.s8 %v472
      %v474 = vlaneseq
      %v475 = vshrl.u32 %v474, 7
      %v476 = vsub.s32 %v473, %v475
      %v477 = vrot.slane %v342, %v476
      %v479 = vunpack.c.l.s4 1983009808
      %v480 = vunpack.c.0.s8 %v479
      %v481 = vlaneseq
      %v482 = vshrl.u32 %v481, 7
      %v483 = vsub.s32 %v480, %v482
      %v484 = vrot.slane %v470, %v483
      %v485 = vcombine.high %v477, %v477
      %v486 = vcombine.high %v484, %v484
      %vm519 = vcmask 58368
      %v520 = vsel %vm519, %v358, 0.0
      %v521 = vrot.slane %v520, 4
      %v522 = vadd.f32 %v520, %v521
      %v523 = vrot.slane %v522, 2
      %v524 = vadd.f32 %v522, %v523
      %v525 = vrot.slane %v524, 1
      %v526 = vadd.f32 %v524, %v525
      %v527 = vsel %vm519, %v366, 0.0
      %v528 = vrot.slane %v527, 4
      %v529 = vadd.f32 %v527, %v528
      %v530 = vrot.slane %v529, 2
      %v531 = vadd.f32 %v529, %v530
      %v532 = vrot.slane %v531, 1
      %v533 = vadd.f32 %v531, %v532
      %v534 = vsel %vm519, %v365, 0.0
      %v535 = vrot.slane %v534, 4
      %v536 = vadd.f32 %v534, %v535
      %v537 = vrot.slane %v536, 2
      %v538 = vadd.f32 %v536, %v537
      %v539 = vrot.slane %v538, 1
      %v540 = vadd.f32 %v538, %v539
      %v541 = vsel %vm519, %v367, 0.0
      %v542 = vrot.slane %v541, 4
      %v543 = vadd.f32 %v541, %v542
      %v544 = vrot.slane %v543, 2
      %v545 = vadd.f32 %v543, %v544
      %v546 = vrot.slane %v545, 1
      %v547 = vadd.f32 %v545, %v546
      %v548 = vsel %vm519, %v375, 0.0
      %v549 = vrot.slane %v548, 4
      %v550 = vadd.f32 %v548, %v549
      %v551 = vrot.slane %v550, 2
      %v552 = vadd.f32 %v550, %v551
      %v553 = vrot.slane %v552, 1
      %v554 = vadd.f32 %v552, %v553
      %v555 = vsel %vm519, %v383, 0.0
      %v556 = vrot.slane %v555, 4
      %v557 = vadd.f32 %v555, %v556
      %v558 = vrot.slane %v557, 2
      %v559 = vadd.f32 %v557, %v558
      %v560 = vrot.slane %v559, 1
      %v561 = vadd.f32 %v559, %v560
      %v562 = vsel %vm519, %v382, 0.0
      %v563 = vrot.slane %v562, 4
      %v564 = vadd.f32 %v562, %v563
      %v565 = vrot.slane %v564, 2
      %v566 = vadd.f32 %v564, %v565
      %v567 = vrot.slane %v566, 1
      %v568 = vadd.f32 %v566, %v567
      %v569 = vsel %vm519, %v384, 0.0
      %v570 = vrot.slane %v569, 4
      %v571 = vadd.f32 %v569, %v570
      %v572 = vrot.slane %v571, 2
      %v573 = vadd.f32 %v571, %v572
      %v574 = vrot.slane %v573, 1
      %v575 = vadd.f32 %v573, %v574
      %v576 = vsel %vm519, %v392, 0.0
      %v577 = vrot.slane %v576, 4
      %v578 = vadd.f32 %v576, %v577
      %v579 = vrot.slane %v578, 2
      %v580 = vadd.f32 %v578, %v579
      %v581 = vrot.slane %v580, 1
      %v582 = vadd.f32 %v580, %v581
      %v583 = vsel %vm519, %v400, 0.0
      %v584 = vrot.slane %v583, 4
      %v585 = vadd.f32 %v583, %v584
      %v586 = vrot.slane %v585, 2
      %v587 = vadd.f32 %v585, %v586
      %v588 = vrot.slane %v587, 1
      %v589 = vadd.f32 %v587, %v588
      %v590 = vsel %vm519, %v399, 0.0
      %v591 = vrot.slane %v590, 4
      %v592 = vadd.f32 %v590, %v591
      %v593 = vrot.slane %v592, 2
      %v594 = vadd.f32 %v592, %v593
      %v595 = vrot.slane %v594, 1
      %v596 = vadd.f32 %v594, %v595
      %v597 = vsel %vm519, %v401, 0.0
      %v598 = vrot.slane %v597, 4
      %v599 = vadd.f32 %v597, %v598
      %v600 = vrot.slane %v599, 2
      %v601 = vadd.f32 %v599, %v600
      %v602 = vrot.slane %v601, 1
      %v603 = vadd.f32 %v601, %v602
      %v604 = vsel %vm519, %v409, 0.0
      %v605 = vrot.slane %v604, 4
      %v606 = vadd.f32 %v604, %v605
      %v607 = vrot.slane %v606, 2
      %v608 = vadd.f32 %v606, %v607
      %v609 = vrot.slane %v608, 1
      %v610 = vadd.f32 %v608, %v609
      %v611 = vsel %vm519, %v417, 0.0
      %v612 = vrot.slane %v611, 4
      %v613 = vadd.f32 %v611, %v612
      %v614 = vrot.slane %v613, 2
      %v615 = vadd.f32 %v613, %v614
      %v616 = vrot.slane %v615, 1
      %v617 = vadd.f32 %v615, %v616
      %v618 = vsel %vm519, %v416, 0.0
      %v619 = vrot.slane %v618, 4
      %v620 = vadd.f32 %v618, %v619
      %v621 = vrot.slane %v620, 2
      %v622 = vadd.f32 %v620, %v621
      %v623 = vrot.slane %v622, 1
      %v624 = vadd.f32 %v622, %v623
      %v625 = vsel %vm519, %v418, 0.0
      %v626 = vrot.slane %v625, 4
      %v627 = vadd.f32 %v625, %v626
      %v628 = vrot.slane %v627, 2
      %v629 = vadd.f32 %v627, %v628
      %v630 = vrot.slane %v629, 1
      %v631 = vadd.f32 %v629, %v630
      %v632 = vsel %vm519, %v426, 0.0
      %v633 = vrot.slane %v632, 4
      %v634 = vadd.f32 %v632, %v633
      %v635 = vrot.slane %v634, 2
      %v636 = vadd.f32 %v634, %v635
      %v637 = vrot.slane %v636, 1
      %v638 = vadd.f32 %v636, %v637
      %v639 = vsel %vm519, %v434, 0.0
      %v640 = vrot.slane %v639, 4
      %v641 = vadd.f32 %v639, %v640
      %v642 = vrot.slane %v641, 2
      %v643 = vadd.f32 %v641, %v642
      %v644 = vrot.slane %v643, 1
      %v645 = vadd.f32 %v643, %v644
      %v646 = vsel %vm519, %v433, 0.0
      %v647 = vrot.slane %v646, 4
      %v648 = vadd.f32 %v646, %v647
      %v649 = vrot.slane %v648, 2
      %v650 = vadd.f32 %v648, %v649
      %v651 = vrot.slane %v650, 1
      %v652 = vadd.f32 %v650, %v651
      %v653 = vsel %vm519, %v435, 0.0
      %v654 = vrot.slane %v653, 4
      %v655 = vadd.f32 %v653, %v654
      %v656 = vrot.slane %v655, 2
      %v657 = vadd.f32 %v655, %v656
      %v658 = vrot.slane %v657, 1
      %v659 = vadd.f32 %v657, %v658
      %v660 = vsel %vm519, %v443, 0.0
      %v661 = vrot.slane %v660, 4
      %v662 = vadd.f32 %v660, %v661
      %v663 = vrot.slane %v662, 2
      %v664 = vadd.f32 %v662, %v663
      %v665 = vrot.slane %v664, 1
      %v666 = vadd.f32 %v664, %v665
      %v667 = vsel %vm519, %v451, 0.0
      %v668 = vrot.slane %v667, 4
      %v669 = vadd.f32 %v667, %v668
      %v670 = vrot.slane %v669, 2
      %v671 = vadd.f32 %v669, %v670
      %v672 = vrot.slane %v671, 1
      %v673 = vadd.f32 %v671, %v672
      %v674 = vsel %vm519, %v450, 0.0
      %v675 = vrot.slane %v674, 4
      %v676 = vadd.f32 %v674, %v675
      %v677 = vrot.slane %v676, 2
      %v678 = vadd.f32 %v676, %v677
      %v679 = vrot.slane %v678, 1
      %v680 = vadd.f32 %v678, %v679
      %v681 = vsel %vm519, %v452, 0.0
      %v682 = vrot.slane %v681, 4
      %v683 = vadd.f32 %v681, %v682
      %v684 = vrot.slane %v683, 2
      %v685 = vadd.f32 %v683, %v684
      %v686 = vrot.slane %v685, 1
      %v687 = vadd.f32 %v685, %v686
      %v688 = vsel %vm519, %v460, 0.0
      %v689 = vrot.slane %v688, 4
      %v690 = vadd.f32 %v688, %v689
      %v691 = vrot.slane %v690, 2
      %v692 = vadd.f32 %v690, %v691
      %v693 = vrot.slane %v692, 1
      %v694 = vadd.f32 %v692, %v693
      %v695 = vsel %vm519, %v468, 0.0
      %v696 = vrot.slane %v695, 4
      %v697 = vadd.f32 %v695, %v696
      %v698 = vrot.slane %v697, 2
      %v699 = vadd.f32 %v697, %v698
      %v700 = vrot.slane %v699, 1
      %v701 = vadd.f32 %v699, %v700
      %v702 = vsel %vm519, %v467, 0.0
      %v703 = vrot.slane %v702, 4
      %v704 = vadd.f32 %v702, %v703
      %v705 = vrot.slane %v704, 2
      %v706 = vadd.f32 %v704, %v705
      %v707 = vrot.slane %v706, 1
      %v708 = vadd.f32 %v706, %v707
      %v709 = vsel %vm519, %v469, 0.0
      %v710 = vrot.slane %v709, 4
      %v711 = vadd.f32 %v709, %v710
      %v712 = vrot.slane %v711, 2
      %v713 = vadd.f32 %v711, %v712
      %v714 = vrot.slane %v713, 1
      %v715 = vadd.f32 %v713, %v714
      %v716 = vsel %vm519, %v477, 0.0
      %v717 = vrot.slane %v716, 4
      %v718 = vadd.f32 %v716, %v717
      %v719 = vrot.slane %v718, 2
      %v720 = vadd.f32 %v718, %v719
      %v721 = vrot.slane %v720, 1
      %v722 = vadd.f32 %v720, %v721
      %v723 = vsel %vm519, %v485, 0.0
      %v724 = vrot.slane %v723, 4
      %v725 = vadd.f32 %v723, %v724
      %v726 = vrot.slane %v725, 2
      %v727 = vadd.f32 %v725, %v726
      %v728 = vrot.slane %v727, 1
      %v729 = vadd.f32 %v727, %v728
      %v730 = vsel %vm519, %v484, 0.0
      %v731 = vrot.slane %v730, 4
      %v732 = vadd.f32 %v730, %v731
      %v733 = vrot.slane %v732, 2
      %v734 = vadd.f32 %v732, %v733
      %v735 = vrot.slane %v734, 1
      %v736 = vadd.f32 %v734, %v735
      %v737 = vsel %vm519, %v486, 0.0
      %v738 = vrot.slane %v737, 4
      %v739 = vadd.f32 %v737, %v738
      %v740 = vrot.slane %v739, 2
      %v741 = vadd.f32 %v739, %v740
      %v742 = vrot.slane %v741, 1
      %v743 = vadd.f32 %v741, %v742
      %v744 = vld [vmem:[%s3] sm:$0xff]
      %vm777 = vcmask 1041409
      %v778 = vsel %vm777, %v533, %v526
      %vm779 = vcmask 1042434
      %v780 = vsel %vm779, %v540, %v778
      %vm781 = vcmask 1043459
      %v782 = vsel %vm781, %v547, %v780
      %vm783 = vcmask 1044484
      %v784 = vsel %vm783, %v554, %v782
      %vm785 = vcmask 1045509
      %v786 = vsel %vm785, %v561, %v784
      %vm787 = vcmask 1046534
      %v788 = vsel %vm787, %v568, %v786
      %vm789 = vcmask 1047559
      %v790 = vsel %vm789, %v575, %v788
      %v791 = vsel %vm777, %v589, %v582
      %v792 = vsel %vm779, %v596, %v791
      %v793 = vsel %vm781, %v603, %v792
      %v794 = vsel %vm783, %v610, %v793
      %v795 = vsel %vm785, %v617, %v794
      %v796 = vsel %vm787, %v624, %v795
      %v797 = vsel %vm789, %v631, %v796
      %v798 = vsel %vm777, %v645, %v638
      %v799 = vsel %vm779, %v652, %v798
      %v800 = vsel %vm781, %v659, %v799
      %v801 = vsel %vm783, %v666, %v800
      %v802 = vsel %vm785, %v673, %v801
      %v803 = vsel %vm787, %v680, %v802
      %v804 = vsel %vm789, %v687, %v803
      %v805 = vsel %vm777, %v701, %v694
      %v806 = vsel %vm779, %v708, %v805
      %v807 = vsel %vm781, %v715, %v806
      %v808 = vsel %vm783, %v722, %v807
      %v809 = vsel %vm785, %v729, %v808
      %v810 = vsel %vm787, %v736, %v809
      %v811 = vsel %vm789, %v743, %v810
      %v812 = vsel %vm318, %v790, 0
      %v814 = vsel %vm318, %v797, 0
      %v816 = vsel %vm318, %v804, 0
      %v818 = vsel %vm318, %v811, 0
      %820 = vmatprep.subr.mxu0 0.0
      %821 = vmatpush1.msra.mxu0 0.0
      %822 = vmatprep.subr.mxu0 0.0
      %823 = vmatpush1.msra.mxu0 0.0
      %824 = vmatprep.subr.mxu0 0.0
      %825 = vmatpush1.msra.mxu0 0.0
      %826 = vmatprep.subr.mxu0 0.0
      %827 = vmatpush1.msra.mxu0 0.0
      %828 = vmatprep.subr.mxu0 0.0
      %829 = vmatpush1.msra.mxu0 0.0
      %830 = vmatprep.subr.mxu0 0.0
      %831 = vmatpush1.msra.mxu0 0.0
      %832 = vmatprep.subr.mxu0 0.0
      %833 = vmatpush1.msra.mxu0 0.0
      %834 = vmatprep.subr.mxu0 0.0
      %835 = vmatpush1.msra.mxu0 0.0
      %836 = vmatprep.subr.mxu0 0.0
      %837 = vmatpush1.msra.mxu0 0.0
      %838 = vmatprep.subr.mxu0 0.0
      %839 = vmatpush1.msra.mxu0 0.0
      %840 = vmatprep.subr.mxu0 0.0
      %841 = vmatpush1.msra.mxu0 0.0
      %842 = vmatprep.subr.mxu0 0.0
      %843 = vmatpush1.msra.mxu0 0.0
      %844 = vmatprep.subr.mxu0 0.0
      %845 = vmatpush1.msra.mxu0 0.0
      %846 = vmatprep.subr.mxu0 0.0
      %847 = vmatpush1.msra.mxu0 0.0
      %848 = vmatprep.subr.mxu0 0.0
      %849 = vmatpush1.msra.mxu0 0.0
      %850 = vmatprep.subr.mxu0 0.0
      %851 = vmatpush1.msra.mxu0 %v744
      %852 = vmatprep.subr.mxu0 0.0
      %853 = vmatpush2.msra.mxu0 0.0
      %854 = vmatprep.subr.mxu0 0.0
      %855 = vmatpush2.msra.mxu0 0.0
      %856 = vmatprep.subr.mxu0 0.0
      %857 = vmatpush2.msra.mxu0 0.0
      %858 = vmatprep.subr.mxu0 0.0
      %859 = vmatpush2.msra.mxu0 0.0
      %860 = vmatprep.subr.mxu0 0.0
      %861 = vmatpush2.msra.mxu0 0.0
      %862 = vmatprep.subr.mxu0 0.0
      %863 = vmatpush2.msra.mxu0 0.0
      %864 = vmatprep.subr.mxu0 0.0
      %865 = vmatpush2.msra.mxu0 0.0
      %866 = vmatprep.subr.mxu0 0.0
      %867 = vmatpush2.msra.mxu0 0.0
      %868 = vmatprep.subr.mxu0 0.0
      %869 = vmatpush2.msra.mxu0 0.0
      %870 = vmatprep.subr.mxu0 0.0
      %871 = vmatpush2.msra.mxu0 0.0
      %872 = vmatprep.subr.mxu0 0.0
      %873 = vmatpush2.msra.mxu0 0.0
      %874 = vmatprep.subr.mxu0 0.0
      %875 = vmatpush2.msra.mxu0 0.0
      %876 = vmatprep.subr.mxu0 0.0
      %877 = vmatpush2.msra.mxu0 0.0
      %878 = vmatprep.subr.mxu0 0.0
      %879 = vmatpush2.msra.mxu0 0.0
      %880 = vmatprep.subr.mxu0 0.0
      %881 = vmatpush2.msra.mxu0 0.0
      %882 = vmatprep.subr.mxu0 0.0
      %883 = vmatpush2.msra.mxu0 0.0
      %884 = vmatprep.mubr.f32.mxu0 0.0
      %885 = vmatmul.mubr.f32.gmra.mxu0 %v812
      %v886 = vpop.f32.mrf.mxu0
      %v887 = vadd.f32 0.0, %v886
      %v888 = vpop.f32.mrf.mxu0
      %889 = vmatprep.mubr.f32.mxu0 0.0
      %890 = vmatmul.mubr.f32.gmra.mxu0 %v814
      %v891 = vpop.f32.mrf.mxu0
      %v892 = vadd.f32 0.0, %v891
      %v893 = vpop.f32.mrf.mxu0
      %894 = vmatprep.mubr.f32.mxu0 0.0
      %895 = vmatmul.mubr.f32.gmra.mxu0 %v816
      %v896 = vpop.f32.mrf.mxu0
      %v897 = vadd.f32 0.0, %v896
      %v898 = vpop.f32.mrf.mxu0
      %899 = vmatprep.mubr.f32.mxu0 0.0
      %900 = vmatmul.mubr.f32.gmra.mxu0 %v818
      %v901 = vpop.f32.mrf.mxu0
      %v902 = vadd.f32 0.0, %v901
      %v903 = vpop.f32.mrf.mxu0
      %904 = vdwg.mxu0
      %vm905 = vcmask 31744
      %906 = vst.msk [vmem:[%s238] sm:$0xff] %vm905, %v887
      %907 = vst.msk [vmem:[%s238 + $0x8] sm:$0xff] %vm905, %v892
      %908 = vst.msk [vmem:[%s238 + $0x10] sm:$0xff] %vm905, %v897
      %909 = vst.msk [vmem:[%s238 + $0x18] sm:$0xff] %vm905, %v902
      %s910 = smul.u32 4, %s20
      %p911 = scmp.lt.s32.totalorder %s19, 1
      %s912 = scalar_select %p911, %s19, 1
      %p913 = scmp.lt.s32.totalorder %s910, 7
      %s914 = scalar_select %p913, %s910, 7
      %s915 = smul.addr %s912, 8
      %s916 = sadd.s32 %s914, %s915
      %s917 = smul.addr %s916, 8
      %s918 = scalar_lea.vmem %s4, %s917
      // Predicated region
      $region37: #{tpu_custom_call.1} parent=35 // pred_check
        %p919 = pneg %p138
      $region38: #{tpu_custom_call.1} parent=35 // pred_check_branch
        %921 = sbr.rel (%p919) target = $region40
      $region39: #{tpu_custom_call.1} parent=35 // pred_region
        %s922 = smul.u32 4, %s20
      $region40: #{tpu_custom_call.1} parent=35 // pred_fallthru
        _
    $region36: #{tpu_custom_call.1} parent=5 // pred_fallthru
      _
    %p923 = scmp.le.s32.totalorder 2, %s10
    // Predicated region
    $region41: #{tpu_custom_call.1} parent=5 // pred_check
      %p924 = pneg %p923
    $region42: #{tpu_custom_call.1} parent=5 // pred_check_branch
      %926 = sbr.rel (%p924) target = $region44
    $region43: #{tpu_custom_call.1} parent=5 // pred_region
      %s927 = ssub.s32 %s10, 2
      // Predicated region
      $region45: #{tpu_custom_call.1} parent=43 // pred_check
        %p928 = pneg %p144
      $region46: #{tpu_custom_call.1} parent=43 // pred_check_branch
        %930 = sbr.rel (%p928) target = $region48
      $region47: #{tpu_custom_call.1} parent=43 // pred_region
        %s931 = smul.u32 4, %s22
        %p932 = scmp.lt.s32.totalorder %s21, 1
        %s933 = scalar_select %p932, %s21, 1
        %p934 = scmp.lt.s32.totalorder %s931, 7
        %s935 = scalar_select %p934, %s931, 7
        %s936 = smul.addr %s933, 8
        %s937 = sadd.s32 %s935, %s936
        %s938 = smul.addr %s937, 8
        %s939 = scalar_lea.vmem %s4, %s938
      $region48: #{tpu_custom_call.1} parent=43 // pred_fallthru
        _
    $region44: #{tpu_custom_call.1} parent=5 // pred_fallthru
      _
  $region6: #{tpu_custom_call.1} parent=0 // loop_footer
    %s14 = sadd.s32 1, %s10
  $region7: #{tpu_custom_call.1} parent=0 // loop_footer_branch
    %9 = sbr.rel target = $region3
  $region8: #{tpu_custom_call.1} parent=0 // loop_exit
    _

</llo_original>
